<compile_context>
chip_gen: v7x
topology: tpu7x:2x2x1
jax: 0.10.0
libtpu: 0.0.40
codegen_flags: <defaults>
</compile_context>

<pallas_src>
import functools

import jax
import jax.numpy as jnp
from jax.experimental import pallas as pl
from jax.experimental.pallas import tpu as pltpu


def _round_up(x, m):
    return ((x + m - 1) // m) * m


def _cdiv(a, b):
    return (a + b - 1) // b


# ---------------------------------------------------------------------------
# Kernel 1: weight normalization (runs exactly once, outside the batch grid).
#   w = v * g / ||v||_2  with the L2 norm over all dims except dim 0.
#   Input columns are already laid out in (tap, in_channel_padded) order and
#   zero-padded channels contribute 0 to the norm, so the result is exact.
# ---------------------------------------------------------------------------
def _weight_norm_kernel(wv_ref, g_ref, w_ref):
    wv = wv_ref[...].astype(jnp.float32)                 # (C_out, K*C_in_p)
    sq = jnp.sum(wv * wv, axis=1, keepdims=True)         # (C_out, 1)
    # Matches torch weight_norm exactly (no epsilon): an all-zero weight_v
    # row yields inf/NaN in both implementations (documented parity).
    scale = g_ref[...].astype(jnp.float32) * jax.lax.rsqrt(sq)
    w_ref[...] = (wv * scale).astype(w_ref.dtype)


# ---------------------------------------------------------------------------
# Kernel 2: conv1d as ONE fused MXU matmul per (batch, L-tile) grid step.
# ---------------------------------------------------------------------------
def _conv1d_kernel(w_ref, b_ref, xc_ref, xh_ref, out_ref, rhs_ref, *,
                   k_taps, c_in_p, dilation):
    # w_ref  : (C_out, K*C_in_p)  normalized filters, (tap, channel) columns
    # b_ref  : (C_out, 1)         bias
    # xc_ref : (1, C_in_p, T)     current padded-input tile
    # xh_ref : (1, C_in_p, H)     halo: first H columns after the tile
    # out_ref: (1, C_out, T)      output tile (last block partially masked)
    # rhs_ref: (K*C_in_p, T)      VMEM scratch: stacked tap-shifted input
    t = out_ref.shape[2]

    # Build the stacked RHS: row block k holds x_p[:, tile_start + k*d + j].
    # All offsets/sizes are static -> plain shifted vector copies.
    for k in range(k_taps):
        off = k * dilation
        r0 = k * c_in_p
        lo = t - off
        if off == 0:
            rhs_ref[pl.ds(r0, c_in_p), :] = xc_ref[0]
        else:
            if lo > 0:
                rhs_ref[pl.ds(r0, c_in_p), pl.ds(0, lo)] = \
                    xc_ref[0, :, pl.ds(off, lo)]
            rhs_ref[pl.ds(r0, c_in_p), pl.ds(lo, off)] = \
                xh_ref[0, :, pl.ds(0, off)]

    # Single MXU matmul with contraction depth K*C_in_p; f32 accumulation.
    acc = jnp.dot(w_ref[...], rhs_ref[...],
                  preferred_element_type=jnp.float32)
    out_ref[0] = (acc + b_ref[...].astype(jnp.float32)).astype(out_ref.dtype)


def _choose_l_tile(l_out, h, c_in_p, c_out, k, itemsize):
    """Largest L tile (multiple of H) whose per-step VMEM estimate fits the
    default scoped VMEM on every generation (v5e 16 MiB, v6e/v7x 32 MiB)."""
    budget = 12 * 1024 * 1024
    units_cap = max(1, _cdiv(l_out, h))           # H-units needed to cover L_out
    units = max(1, min(1024 // h, units_cap))     # target ~1024-lane tiles

    def est(t):
        return itemsize * (2 * c_in_p * t          # x tile, double-buffered
                           + 2 * c_in_p * h        # halo tile
                           + 2 * c_out * t         # out tile
                           + k * c_in_p * t        # stacked RHS scratch
                           + 2 * c_out * k * c_in_p  # resident filters
                           + 2 * c_out)            # bias

    while units > 1 and est(units * h) > budget:
        units -= 1
    return units * h


def conv1d_wt_norm(x, weight_v, weight_g, bias, *, stride=1, padding=0,
                   dilation=1):
    """Weight-normalized 1D convolution (forward of Conv1dWtNorm).

    x:        (N, C_in, L)       float32
    weight_v: (C_out, C_in, K)   float32
    weight_g: (C_out, 1, 1)      float32
    bias:     (C_out,)           float32
    returns:  (N, C_out, L_out)  float32
    """
    if stride != 1:
        # TODO(synk): strided lane gathers do not lower cleanly on Mosaic.
        raise NotImplementedError("Pallas Conv1dWtNorm supports stride=1 only")

    N, C_in, L = x.shape
    C_out, _, K = weight_v.shape
    halo = (K - 1) * dilation
    L_out = L + 2 * padding - halo
    assert L_out >= 1, "conv output length must be positive"

    itemsize = jnp.dtype(x.dtype).itemsize
    C_in_p = _round_up(C_in, 8)                 # sublane-aligned channel slabs

    # --- one-shot weight-norm kernel (hoisted out of the batch/L grid) -----
    # Reorder once to (tap, channel) column order and zero-pad channels so
    # the fused-matmul RHS can be built with contiguous, aligned slab copies.
    wv_kc = jnp.transpose(weight_v, (0, 2, 1))                  # (C_out,K,C_in)
    wv_kc = jnp.pad(wv_kc, ((0, 0), (0, 0), (0, C_in_p - C_in)))
    wv_flat = wv_kc.reshape(C_out, K * C_in_p).astype(x.dtype)
    g_flat = weight_g.reshape(C_out, 1).astype(x.dtype)
    w_flat = pl.pallas_call(
        _weight_norm_kernel,
        out_shape=jax.ShapeDtypeStruct((C_out, K * C_in_p), x.dtype),
    )(wv_flat, g_flat)
    b_flat = bias.reshape(C_out, 1).astype(x.dtype)

    # --- tiling --------------------------------------------------------------
    H = _round_up(max(halo, 1), 128)                 # halo block (lane-aligned)
    T = _choose_l_tile(L_out, H, C_in_p, C_out, K, itemsize)   # T % H == 0
    grid_l = _cdiv(L_out, T)
    L_xp = grid_l * T + H                            # padded input length

    # Single minimal input pad: conv zero-padding on the left, zeros on the
    # right up to the halo of the last tile, zero channels up to C_in_p.
    x_p = jnp.pad(x, ((0, 0), (0, C_in_p - C_in),
                      (padding, L_xp - L - padding)))

    flops = 2 * N * grid_l * C_out * (K * C_in_p) * T
    bytes_accessed = itemsize * (N * grid_l * (C_in_p * (T + H) + C_out * T)
                                 + C_out * (K * C_in_p + 1))

    kernel = functools.partial(_conv1d_kernel, k_taps=K, c_in_p=C_in_p,
                               dilation=dilation)
    out = pl.pallas_call(
        kernel,
        out_shape=jax.ShapeDtypeStruct((N, C_out, L_out), x.dtype),
        grid_spec=pltpu.PrefetchScalarGridSpec(
            num_scalar_prefetch=0,
            grid=(N, grid_l),
            in_specs=[
                # constant index_maps -> filters & bias DMA'd once, resident.
                # (pipeline_mode=pl.Buffered(1) would also drop their second
                #  buffer; omitted to stay on the safest lowering path.)
                pl.BlockSpec((C_out, K * C_in_p), lambda n, l: (0, 0)),
                pl.BlockSpec((C_out, 1), lambda n, l: (0, 0)),
                # current input tile: columns [l*T, (l+1)*T)
                pl.BlockSpec((1, C_in_p, T), lambda n, l: (n, 0, l)),
                # halo tile: columns [(l+1)*T, (l+1)*T + H)
                pl.BlockSpec((1, C_in_p, H),
                             lambda n, l: (n, 0, (l + 1) * (T // H))),
            ],
            out_specs=pl.BlockSpec((1, C_out, T), lambda n, l: (n, 0, l)),
            scratch_shapes=[pltpu.VMEM((K * C_in_p, T), x.dtype)],
        ),
        compiler_params=pltpu.CompilerParams(
            # both axes independent -> megacore (v7x) gets work even for N=1
            dimension_semantics=("parallel", "parallel")),
        cost_estimate=pl.CostEstimate(flops=flops, transcendentals=0,
                                      bytes_accessed=bytes_accessed),
    )(w_flat, b_flat, x_p, x_p)
    return out


def _reference(x, weight_v, weight_g, bias, *, stride, padding, dilation):
    """Pure-JAX reference (lax.conv) for a sanity check."""
    norm = jnp.sqrt(jnp.sum(weight_v ** 2, axis=(1, 2), keepdims=True))
    w = weight_v * (weight_g / norm)
    y = jax.lax.conv_general_dilated(
        x, w, window_strides=(stride,), padding=[(padding, padding)],
        rhs_dilation=(dilation,),
        dimension_numbers=("NCH", "OIH", "NCH"))
    return y + bias[None, :, None]


if __name__ == "__main__":
    # Small TCN-like config: Conv1dWtNorm(in=4, out=8, kernel_size=3).
    N, C_in, C_out, L, K = 2, 4, 8, 16, 3

    key = jax.random.PRNGKey(0)
    kx, kv, kg, kb = jax.random.split(key, 4)
    x = jax.random.normal(kx, (N, C_in, L), dtype=jnp.float32)
    weight_v = jax.random.normal(kv, (C_out, C_in, K), dtype=jnp.float32) * 0.3
    weight_g = jax.random.uniform(kg, (C_out, 1, 1), dtype=jnp.float32,
                                  minval=0.5, maxval=1.5)
    bias = jax.random.normal(kb, (C_out,), dtype=jnp.float32) * 0.1

    # (stride, padding, dilation): standard conv and a dilated TCN-style conv.
    for stride, padding, dilation in [(1, 1, 1), (1, 2, 2)]:
        y = conv1d_wt_norm(x, weight_v, weight_g, bias,
                           stride=stride, padding=padding, dilation=dilation)
        y = jax.block_until_ready(y)
        y_ref = _reference(x, weight_v, weight_g, bias,
                           stride=stride, padding=padding, dilation=dilation)
        assert y.shape == y_ref.shape, (y.shape, y_ref.shape)
        assert jnp.max(jnp.abs(y - y_ref)) < 1e-4

    print("KERNEL_OK")
</pallas_src>

<mosaic_0001>
module attributes {stable_mosaic.version = 11 : i64} {
  func.func @_weight_norm_kernel(%arg0: memref<8x24xf32, #tpu.memory_space<vmem>>, %arg1: memref<8x1xf32, #tpu.memory_space<vmem>>, %arg2: memref<8x24xf32, #tpu.memory_space<vmem>>) attributes {dimension_semantics = [], scalar_prefetch = 0 : i64, scratch_operands = 0 : i64, tpu.core_type = #tpu.core_type<tc>} {
    %c0 = arith.constant 0 : index
    %c0_0 = arith.constant 0 : index
    %0 = vector.load %arg0[%c0, %c0_0] : memref<8x24xf32, #tpu.memory_space<vmem>>, vector<8x24xf32>
    %1 = arith.mulf %0, %0 : vector<8x24xf32>
    %cst = arith.constant dense<0.000000e+00> : vector<8xf32>
    %2 = vector.multi_reduction <add>, %1, %cst [1] : vector<8x24xf32> to vector<8xf32>
    %3 = vector.shape_cast %2 : vector<8xf32> to vector<8x1xf32>
    %c0_1 = arith.constant 0 : index
    %c0_2 = arith.constant 0 : index
    %4 = vector.load %arg1[%c0_1, %c0_2] : memref<8x1xf32, #tpu.memory_space<vmem>>, vector<8x1xf32>
    %5 = math.rsqrt %3 : vector<8x1xf32>
    %6 = arith.mulf %4, %5 : vector<8x1xf32>
    %7 = vector.broadcast %6 : vector<8x1xf32> to vector<8x24xf32>
    %8 = arith.mulf %0, %7 : vector<8x24xf32>
    %c0_3 = arith.constant 0 : index
    %c0_4 = arith.constant 0 : index
    %9 = vector.load %arg2[%c0_3, %c0_4] : memref<8x24xf32, #tpu.memory_space<vmem>>, vector<8x24xf32>
    tpu.vector_store %arg2[%c0_3, %c0_4], %8 {strides = array<i32>} : memref<8x24xf32, #tpu.memory_space<vmem>>, vector<8x24xf32>,
    return
  }
}

</mosaic_0001>

<llo_original>
// kernel: tpu_custom_call.1
$region0: #{tpu_custom_call.1}
  #allocation0 [shape = 'u32[]', space=smem, size = 0x4, offset = 0x4, fixed_abs, tag = 'smem constant byte address 0x4 - core index']
  #allocation1 [shape = 'u32[144,128]{1,0:T(1,128)}', space=vmem, size = 0x12000, scoped, tag = 'internal scratch']
  %s0 = inlined_call_operand.vmem [shape: f32[8,24], index: 0, kind: input, shape index: {}]
  %s1 = inlined_call_operand.vmem [shape: f32[8,1], index: 1, kind: input, shape index: {}]
  %s2 = inlined_call_operand.hbm [shape: f32[8,24], index: 2, kind: output, shape index: {}]
  %s3 = sld [smem:[#allocation0]]
  $region18: #{tpu_custom_call.1} parent=0
    _
  %s5 = ssub.s32 1, %s3
  %s6 = scalar_select 0, %s5, %s3
  $region1: #{tpu_custom_call.1} parent=0
    #allocation2 [shape = 'u8[4096]{0}', space=vmem, size = 0x1000, scoped, tag = 'output window, operand 0, single buffered']
    #allocation3 [shape = 's32[1]{0}', space=sflag, size = 0x4, scoped, tag = 'scoped memory for tpu_custom_call.1']
    %7 = vsyncpa [#allocation3], 0
    // Predicated region
    $region2: #{tpu_custom_call.1} parent=1 // pred_check
      _
    $region3: #{tpu_custom_call.1} parent=1 // pred_check_branch
      %9 = sbr.rel (0) target = $region5
    $region4: #{tpu_custom_call.1} parent=1 // pred_region
      _
    $region5: #{tpu_custom_call.1} parent=1 // pred_fallthru
      _
    // Predicated region
    $region6: #{tpu_custom_call.1} parent=1 // pred_check
      _
    $region7: #{tpu_custom_call.1} parent=1 // pred_check_branch
      %11 = sbr.rel (0) target = $region9
    $region8: #{tpu_custom_call.1} parent=1 // pred_region
      _
    $region9: #{tpu_custom_call.1} parent=1 // pred_fallthru
      _
    %v12 = vld [vmem:[%s0] sm:$0xff]
    %v13 = vmul.f32 %v12, %v12
    %vm14 = vcmask 195584
    %v15 = vsel %vm14, %v13, 0.0
    %16 = vadd.xlane.f32.xlu0 %v15
    %v17 = vpop.xlane.xlu0 %16
    %v18 = vld [vmem:[%s1] sm:$0xff]
    %v19 = vrsqrt.pop %v17
    %v20 = vmul.f32 %v18, %v19
    %22 = vset.pattern.permute.xlu0 0
    %23 = vperm.xlu0 %22, %v20
    %v24 = vpop.permute.xlu0 %23
    %v26 = vmul.f32 %v12, %v24
    %27 = vst.msk [vmem:[#allocation2] sm:$0xff] %vm14, %v26
    // Predicated region
    $region10: #{tpu_custom_call.1} parent=1 // pred_check
      _
    $region11: #{tpu_custom_call.1} parent=1 // pred_check_branch
      %29 = sbr.rel (0) target = $region13
    $region12: #{tpu_custom_call.1} parent=1 // pred_region
      %s31 = ssub.s32 128, 128
      %32 = vsyncadd [#allocation3], %s31
      %s34 = sshll.u32 [#allocation2], 4
      %s35 = int_to_ptr.vmem [resolvable:$true] %s34
      %37 = dma.vmem_to_hbm [thread:$0]  %s35, 128, %s2, [#allocation3]
    $region13: #{tpu_custom_call.1} parent=1 // pred_fallthru
      _
    // Predicated region
    $region14: #{tpu_custom_call.1} parent=1 // pred_check
      _
    $region15: #{tpu_custom_call.1} parent=1 // pred_check_branch
      %39 = sbr.rel (0) target = $region17
    $region16: #{tpu_custom_call.1} parent=1 // pred_region
      %40 = dma.done [#allocation3], 128
    $region17: #{tpu_custom_call.1} parent=1 // pred_fallthru
      _
    %41 = vsyncpa [#allocation3], 1

</llo_original>
